<compile_context>
chip_gen: v6e
topology: v6e:2x2x1
jax: 0.10.0
libtpu: 0.0.40
codegen_flags: <defaults>
</compile_context>

<pallas_src>
import math
import functools

import numpy as np
import jax
import jax.numpy as jnp
from jax.experimental import pallas as pl
from jax.experimental.pallas import tpu as pltpu

# ----------------------------- QDT constants --------------------------------
LAMBDA = 0.867
PHI = 1.618033
CRYSTAL_FREQUENCY = 1.618033
CRYSTAL_AMPLITUDE = 0.3
COHERENCE_STRENGTH = 0.9
VOCAB_RESONANCE = 0.25
SEMANTIC_COUPLING = 0.15

LANE = 128                       # pad last dims to the TPU lane width
VMEM_LIMIT = 64 * 1024 * 1024    # scoped VMEM limit (fits v7x's 64 MiB)


def _rup(n):
    return ((n + LANE - 1) // LANE) * LANE


# ------------------------------ kernel helpers -------------------------------
def _gelu_exact(x):
    # matches torch nn.GELU() (approximate='none')
    return 0.5 * x * (1.0 + jax.lax.erf(x * 0.7071067811865476))


def _layernorm_masked(x, g, b, mask, n_valid, eps=1e-5):
    # Two-pass (masked) LayerNorm over the first n_valid lanes only; padded
    # lanes never pollute the statistics, and (zero-padded) g/b keep padded
    # output lanes exactly zero.
    inv_n = 1.0 / n_valid
    mu = jnp.sum(x * mask, axis=-1, keepdims=True) * inv_n
    d = (x - mu) * mask
    var = jnp.sum(d * d, axis=-1, keepdims=True) * inv_n
    return d * jax.lax.rsqrt(var + eps) * g + b


# --------------------------- 1) embedding gather ------------------------------
def gather_kernel(ids_ref, emb_ref, out_ref):
    # emb_ref : (1, 1, EP) block chosen by the data-dependent index_map (ids[i])
    # out_ref : (1, 1, EP) block at row i
    del ids_ref
    out_ref[...] = emb_ref[...]


# ------------------------------ 2) backbone -----------------------------------
def backbone_kernel(emb_ref, se_w_ref, cg_w_ref, gvec_ref,
                    wqkv_ref, wo_ref, w1_ref, w2_ref, wg_ref, evec_ref,
                    hout_ref, h_ref, *,
                    B, S, E, num_heads, num_layers,
                    osc, enh_factor, void_weight, filament_weight):
    l = pl.program_id(0)
    BS = B * S
    EP = h_ref.shape[-1]
    hd = E // num_heads
    scale = 1.0 / math.sqrt(hd)
    mask = (jax.lax.broadcasted_iota(jnp.int32, (1, EP), 1) < E).astype(jnp.float32)

    # ---- TextTimeCrystal.update_text_crystal (fresh module, step 0 -> 1) -----
    @pl.when(l == 0)
    def _crystal_enhance():
        emb = emb_ref[...]                                      # (BS, EP) f32
        gv = gvec_ref[...]                                      # (3, EP)
        se_b, cg_b, cw = gv[0:1, :], gv[1:2, :], gv[2:3, :]
        avg = jnp.sum(emb, axis=0, keepdims=True) * (1.0 / BS)  # (1, EP)
        text_mod = jnp.tanh(
            jnp.dot(avg.astype(jnp.bfloat16), se_w_ref[...],
                    preferred_element_type=jnp.float32) + se_b)
        crystal_state = (1.0 - 0.98) * osc * cw * (1.0 + text_mod)
        cf = jax.nn.sigmoid(
            jnp.dot(emb.astype(jnp.bfloat16), cg_w_ref[...],
                    preferred_element_type=jnp.float32) + cg_b)
        h_ref[...] = emb + cf * crystal_state * enh_factor

    # ---- QDT layer l (per-layer weight slabs streamed by BlockSpec) ----------
    h = h_ref[...]                                              # (BS, EP) f32
    ev = evec_ref[0]                                            # (16, EP) f32
    bq, bk, bv, bo = ev[0:1, :], ev[1:2, :], ev[2:3, :], ev[3:4, :]
    b1, b2, bg = ev[4:5, :], ev[5:6, :], ev[6:7, :]
    ln1_g, ln1_b = ev[7:8, :], ev[8:9, :]
    ln2_g, ln2_b = ev[9:10, :], ev[10:11, :]

    # single bf16 QKV matmul against 128-aligned Q|K|V weight segments
    qkv = jnp.dot(h.astype(jnp.bfloat16), wqkv_ref[0],
                  preferred_element_type=jnp.float32)           # (BS, 3*EP) f32
    q = (qkv[:, 0:EP] + bq)[:, :E] * scale
    k = (qkv[:, EP:2 * EP] + bk)[:, :E]
    v = (qkv[:, 2 * EP:3 * EP] + bv)[:, :E]
    q3 = q.reshape(B, S, E)
    k3 = k.reshape(B, S, E)
    v3 = v.reshape(B, S, E)

    # multi-head self-attention (no mask, matching nn.MultiheadAttention)
    # TODO(synk): fold this head loop into one batched einsum once multi-batch-dim
    #             dot_general lowering is confirmed.
    head_outs = []
    for hh in range(num_heads):
        lo = hh * hd
        qh = q3[:, :, lo:lo + hd]
        kh = k3[:, :, lo:lo + hd]
        vh = v3[:, :, lo:lo + hd]
        sc = jnp.einsum('bsd,btd->bst', qh, kh,
                        preferred_element_type=jnp.float32)     # (B, S, S)
        sc = sc - jnp.max(sc, axis=-1, keepdims=True)
        p = jnp.exp(sc)
        p = p * pl.reciprocal(jnp.sum(p, axis=-1, keepdims=True), approx=True)
        head_outs.append(jnp.einsum('bst,btd->bsd', p, vh,
                                    preferred_element_type=jnp.float32))
    attn = jnp.concatenate(head_outs, axis=-1).reshape(BS, E)
    attn_out = jnp.dot(attn.astype(jnp.bfloat16), wo_ref[0],
                       preferred_element_type=jnp.float32) + bo  # (BS, EP)

    void_enh = _layernorm_masked(h + attn_out, ln1_g, ln1_b, mask, E)
    f = _gelu_exact(jnp.dot(void_enh.astype(jnp.bfloat16), w1_ref[0],
                            preferred_element_type=jnp.float32) + b1)
    ffn = jnp.dot(f.astype(jnp.bfloat16), w2_ref[0],
                  preferred_element_type=jnp.float32) + b2
    fil_enh = _layernorm_masked(void_enh + ffn, ln2_g, ln2_b, mask, E)
    gate = jax.nn.sigmoid(jnp.dot(fil_enh.astype(jnp.bfloat16), wg_ref[0],
                                  preferred_element_type=jnp.float32) + bg)
    h_new = (void_weight * void_enh + filament_weight * fil_enh) * gate
    h_ref[...] = h_new

    @pl.when(l == num_layers - 1)
    def _store():
        hout_ref[...] = h_new


# ----------------------- 3) vocab-tiled output head ---------------------------
def head_kernel(ids_ref, h_ref, w_ref, b_ref, out_ref, *,
                BS, TN, osc, enh_factor):
    j = pl.program_id(0)
    h_bf = h_ref[...].astype(jnp.bfloat16)                      # (BS, EP)
    # w_ref holds [wout tile | wgate tile] interleaved -> one matmul for both.
    hw = jnp.dot(h_bf, w_ref[...], preferred_element_type=jnp.float32)  # (BS, 2*TN)
    bb = b_ref[...]                                             # (1, 2*TN)
    base = hw[:, 0:TN] + bb[:, 0:TN]
    cmod = jax.nn.sigmoid(hw[:, TN:2 * TN] + bb[:, TN:2 * TN])

    # vocab resonance: per-tile token counts from SMEM-prefetched ids, then
    # closed form vres[id] = osc * (1 - 0.9**count(id)).
    tile_iota = j * TN + jax.lax.broadcasted_iota(jnp.int32, (1, TN), 1)

    def body(i, acc):
        return acc + (tile_iota == ids_ref[i]).astype(jnp.float32)

    counts = jax.lax.fori_loop(0, BS, body, jnp.zeros((1, TN), jnp.float32))
    vres = osc * (1.0 - jnp.exp(counts * math.log(0.9)))

    out_ref[...] = base * (1.0 + cmod * enh_factor) + vres * VOCAB_RESONANCE


# ------------------------------ host-side prep --------------------------------
def _pad_to(a, shape):
    pads = [(0, t - s) for s, t in zip(a.shape, shape)]
    return jnp.pad(a, pads)


def pack_params(params):
    """Zero-pad to lane-dense layouts, cast matmul weights to bf16, stack per-layer
    slabs, and tile-interleave the output-head weights for vocab tiling."""
    V, E = params['embedding'].shape
    H = params['layers'][0]['w1_t'].shape[1]
    L = len(params['layers'])
    EP, HP, VP = _rup(E), _rup(H), _rup(V)
    assert EP == HP, "bias slab packing assumes padded embed and ffn widths match"
    TN = next(t for t in (512, 256, 128) if VP % t == 0)
    nvt = VP // TN

    def bf(x):
        return x.astype(jnp.bfloat16)

    emb = _pad_to(params['embedding'], (VP, EP)).reshape(VP, 1, EP)   # f32 table

    gvec = jnp.stack([_pad_to(params['se_b'], (EP,)),
                      _pad_to(params['cg_b'], (EP,)),
                      _pad_to(params['crystal_weights'], (EP,))])     # (3, EP)

    # interleave wout / wgate per vocab tile: block j = [wout_j | wgate_j]
    wout = _pad_to(params['wout_t'], (EP, VP)).reshape(EP, nvt, TN)
    wgate = _pad_to(params['wgate_t'], (EP, VP)).reshape(EP, nvt, TN)
    w_head = bf(jnp.stack([wout, wgate], axis=2).reshape(EP, 2 * VP))
    bout = _pad_to(params['bout'], (VP,)).reshape(nvt, TN)
    bgate = _pad_to(params['bgate'], (VP,)).reshape(nvt, TN)
    b_head = jnp.stack([bout, bgate], axis=1).reshape(1, 2 * VP)

    wqkv, wo, w1, w2, wg, evec = [], [], [], [], [], []
    zero_row = jnp.zeros((EP,), jnp.float32)
    for lp in params['layers']:
        wq = lp['wqkv_t'][:, 0:E]
        wk = lp['wqkv_t'][:, E:2 * E]
        wv = lp['wqkv_t'][:, 2 * E:3 * E]
        wqkv.append(jnp.concatenate([_pad_to(wq, (EP, EP)),
                                     _pad_to(wk, (EP, EP)),
                                     _pad_to(wv, (EP, EP))], axis=1))  # (EP, 3EP)
        wo.append(_pad_to(lp['wo_t'], (E, EP)))
        w1.append(_pad_to(lp['w1_t'], (EP, HP)))
        w2.append(_pad_to(lp['w2_t'], (HP, EP)))
        wg.append(_pad_to(lp['wg_t'], (EP, EP)))
        rows = [_pad_to(lp['bqkv'][0:E], (EP,)),
                _pad_to(lp['bqkv'][E:2 * E], (EP,)),
                _pad_to(lp['bqkv'][2 * E:3 * E], (EP,)),
                _pad_to(lp['bo'], (EP,)),
                _pad_to(lp['b1'], (HP,)),
                _pad_to(lp['b2'], (EP,)),
                _pad_to(lp['bg'], (EP,)),
                _pad_to(lp['ln1_g'], (EP,)), _pad_to(lp['ln1_b'], (EP,)),
                _pad_to(lp['ln2_g'], (EP,)), _pad_to(lp['ln2_b'], (EP,))]
        rows += [zero_row] * (16 - len(rows))
        evec.append(jnp.stack(rows))                                   # (16, EP)

    packed = dict(
        emb=emb,
        se_w=bf(_pad_to(params['se_w_t'], (EP, EP))),
        cg_w=bf(_pad_to(params['cg_w_t'], (EP, EP))),
        gvec=gvec,
        wqkv=bf(jnp.stack(wqkv)), wo=bf(jnp.stack(wo)),
        w1=bf(jnp.stack(w1)), w2=bf(jnp.stack(w2)), wg=bf(jnp.stack(wg)),
        evec=jnp.stack(evec),
        w_head=w_head, b_head=b_head)
    dims = dict(V=V, E=E, H=H, L=L, EP=EP, HP=HP, VP=VP, TN=TN, nvt=nvt)
    return packed, dims


def crystal_scalars():
    """TextTimeCrystal scalar bookkeeping for a fresh module (time_step 0 -> 1)."""
    time_step = 1
    t = time_step / 100.0
    primary_phase = (2.0 * math.pi * t * CRYSTAL_FREQUENCY) % (2.0 * math.pi)
    semantic_phase = (primary_phase / PHI) % (2.0 * math.pi)
    osc = float(np.float32(CRYSTAL_AMPLITUDE *
                           (math.sin(primary_phase) + 0.3 * math.cos(semantic_phase))))
    coherence = float(np.float32(COHERENCE_STRENGTH))          # time_step <= 10 branch
    enh_factor = float(np.float32(np.float32(COHERENCE_STRENGTH) *
                                  np.float32(SEMANTIC_COUPLING)))
    void_weight = LAMBDA * (1.0 + coherence * SEMANTIC_COUPLING)
    filament_weight = (1.0 - LAMBDA) * (1.0 + coherence * VOCAB_RESONANCE)
    return osc, enh_factor, void_weight, filament_weight


# ------------------------------ forward wrapper --------------------------------
def qdt_forward(input_ids, params, num_heads=8):
    packed, dims = pack_params(params)
    V, E, L = dims['V'], dims['E'], dims['L']
    EP, HP, VP, TN, nvt = dims['EP'], dims['HP'], dims['VP'], dims['TN'], dims['nvt']
    B, S = input_ids.shape
    BS = B * S
    assert E % num_heads == 0
    osc, enh_factor, void_w, fil_w = crystal_scalars()

    ids = input_ids.reshape(BS).astype(jnp.int32)

    def nbytes(keys):
        return int(sum(packed[k].size * packed[k].dtype.itemsize for k in keys))

    # -------- 1) embedding gather (scalar prefetch, data-dependent index_map) ----
    emb = pl.pallas_call(
        gather_kernel,
        out_shape=jax.ShapeDtypeStruct((BS, 1, EP), jnp.float32),
        grid_spec=pltpu.PrefetchScalarGridSpec(
            num_scalar_prefetch=1,
            grid=(BS,),
            in_specs=[pl.BlockSpec((1, 1, EP), lambda i, ids_r: (ids_r[i], 0, 0))],
            out_specs=pl.BlockSpec((1, 1, EP), lambda i, ids_r: (i, 0, 0))),
        compiler_params=pltpu.CompilerParams(
            dimension_semantics=("arbitrary",),
            vmem_limit_bytes=VMEM_LIMIT),
    )(ids, packed['emb'])
    emb = emb.reshape(BS, EP)

    # -------- 2) backbone: layer grid streams per-layer weights ------------------
    backbone = functools.partial(
        backbone_kernel, B=B, S=S, E=E, num_heads=num_heads, num_layers=L,
        osc=osc, enh_factor=enh_factor,
        void_weight=void_w, filament_weight=fil_w)

    backbone_cost = pl.CostEstimate(
        flops=int(L * 2 * BS * EP * (3 * EP + EP + 2 * HP + EP) + 4 * BS * EP * EP),
        transcendentals=int(L * BS * (HP + 2 * EP) + BS * EP),
        bytes_accessed=nbytes(('se_w', 'cg_w', 'gvec', 'wqkv', 'wo',
                               'w1', 'w2', 'wg', 'evec')) + 3 * BS * EP * 4)

    h = pl.pallas_call(
        backbone,
        out_shape=jax.ShapeDtypeStruct((BS, EP), jnp.float32),
        grid_spec=pltpu.PrefetchScalarGridSpec(
            num_scalar_prefetch=0,
            grid=(L,),
            in_specs=[
                pl.BlockSpec((BS, EP), lambda l: (0, 0)),            # gathered emb
                pl.BlockSpec((EP, EP), lambda l: (0, 0)),            # se_w
                pl.BlockSpec((EP, EP), lambda l: (0, 0)),            # cg_w
                pl.BlockSpec((3, EP), lambda l: (0, 0)),             # gvec
                pl.BlockSpec((1, EP, 3 * EP), lambda l: (l, 0, 0)),  # wqkv (per layer)
                pl.BlockSpec((1, E, EP), lambda l: (l, 0, 0)),       # wo
                pl.BlockSpec((1, EP, HP), lambda l: (l, 0, 0)),      # w1
                pl.BlockSpec((1, HP, EP), lambda l: (l, 0, 0)),      # w2
                pl.BlockSpec((1, EP, EP), lambda l: (l, 0, 0)),      # wg
                pl.BlockSpec((1, 16, EP), lambda l: (l, 0, 0)),      # bias/LN slab
            ],
            out_specs=pl.BlockSpec((BS, EP), lambda l: (0, 0)),
            scratch_shapes=[pltpu.VMEM((BS, EP), jnp.float32)]),      # resident h
        compiler_params=pltpu.CompilerParams(
            dimension_semantics=("arbitrary",),
            vmem_limit_bytes=VMEM_LIMIT),
        cost_estimate=backbone_cost,
    )(emb, packed['se_w'], packed['cg_w'], packed['gvec'],
      packed['wqkv'], packed['wo'], packed['w1'], packed['w2'], packed['wg'],
      packed['evec'])

    # -------- 3) vocab-tiled output head ("parallel" across vocab tiles) --------
    head = functools.partial(head_kernel, BS=BS, TN=TN,
                             osc=osc, enh_factor=enh_factor)
    head_cost = pl.CostEstimate(
        flops=int(2 * BS * EP * 2 * VP),
        transcendentals=int(BS * VP + VP),
        bytes_accessed=nbytes(('w_head', 'b_head')) + BS * (EP + VP) * 4)

    logits = pl.pallas_call(
        head,
        out_shape=jax.ShapeDtypeStruct((BS, VP), jnp.float32),
        grid_spec=pltpu.PrefetchScalarGridSpec(
            num_scalar_prefetch=1,
            grid=(nvt,),
            in_specs=[
                pl.BlockSpec((BS, EP), lambda j, ids_r: (0, 0)),      # h (resident)
                pl.BlockSpec((EP, 2 * TN), lambda j, ids_r: (0, j)),  # [wout|wgate] tile
                pl.BlockSpec((1, 2 * TN), lambda j, ids_r: (0, j)),   # [bout|bgate] tile
            ],
            out_specs=pl.BlockSpec((BS, TN), lambda j, ids_r: (0, j))),
        compiler_params=pltpu.CompilerParams(
            dimension_semantics=("parallel",),
            vmem_limit_bytes=VMEM_LIMIT),
        cost_estimate=head_cost,
    )(ids, h, packed['w_head'], packed['b_head'])

    return logits[:, :V].reshape(B, S, V)


# ------------------------------ parameter init --------------------------------
def init_params(key, vocab_size, embed_dim, hidden_dim, num_layers):
    keys = iter(jax.random.split(key, 64))

    def w(shape, scale=0.05):
        return jax.random.normal(next(keys), shape, jnp.float32) * scale

    E, H, V = embed_dim, hidden_dim, vocab_size
    p = {
        'embedding': w((V, E), 0.1),
        # TextTimeCrystal
        'se_w_t': w((E, E)), 'se_b': w((E,), 0.01),             # semantic_enhancer
        'cg_w_t': w((E, E)), 'cg_b': w((E,), 0.01),             # coherence_gate
        'crystal_weights': w((E,), 0.1),
        # output heads
        'wout_t': w((E, V)), 'bout': w((V,), 0.01),
        'wgate_t': w((E, V)), 'bgate': w((V,), 0.01),
        'layers': [],
    }
    for _ in range(num_layers):
        p['layers'].append({
            'wqkv_t': w((E, 3 * E)), 'bqkv': w((3 * E,), 0.01),
            'wo_t': w((E, E)), 'bo': w((E,), 0.01),
            'w1_t': w((E, H)), 'b1': w((H,), 0.01),
            'w2_t': w((H, E)), 'b2': w((E,), 0.01),
            'wg_t': w((E, E)), 'bg': w((E,), 0.01),
            'ln1_g': jnp.ones((E,), jnp.float32), 'ln1_b': jnp.zeros((E,), jnp.float32),
            'ln2_g': jnp.ones((E,), jnp.float32), 'ln2_b': jnp.zeros((E,), jnp.float32),
        })
    return p


# ------------------------------------ main ------------------------------------
if __name__ == "__main__":
    VOCAB, EMBED, HIDDEN, LAYERS = 64, 32, 64, 2   # embed_dim divisible by 8 heads
    B, S = 2, 8

    key = jax.random.PRNGKey(0)
    pkey, dkey = jax.random.split(key)
    params = init_params(pkey, VOCAB, EMBED, HIDDEN, LAYERS)
    input_ids = jax.random.randint(dkey, (B, S), 0, VOCAB, dtype=jnp.int32)

    logits = qdt_forward(input_ids, params, num_heads=8)
    logits = jax.block_until_ready(logits)

    assert logits.shape == (B, S, VOCAB), logits.shape
    assert bool(jnp.all(jnp.isfinite(logits)))
    print("KERNEL_OK")
</pallas_src>

<mosaic_0001>
module attributes {stable_mosaic.version = 11 : i64} {
  func.func @gather_kernel(%arg0: i32, %arg1: memref<16xi32, #tpu.memory_space<smem>>, %arg2: memref<1x1x128xf32, #tpu.memory_space<vmem>>, %arg3: memref<1x1x128xf32, #tpu.memory_space<vmem>>) attributes {dimension_semantics = [#tpu.dimension_semantics<arbitrary>], iteration_bounds = array<i64: 16>, scalar_prefetch = 1 : i64, scratch_operands = 0 : i64, tpu.core_type = #tpu.core_type<tc>, window_params = [{transform_indices = @transform_0, window_bounds = array<i64: 1, 1, 128>}, {transform_indices = @transform_1, window_bounds = array<i64: 1, 1, 128>}]} {
    %c0 = arith.constant 0 : index
    %c0_0 = arith.constant 0 : index
    %c0_1 = arith.constant 0 : index
    %0 = vector.load %arg2[%c0, %c0_0, %c0_1] : memref<1x1x128xf32, #tpu.memory_space<vmem>>, vector<1x1x128xf32>
    %c0_2 = arith.constant 0 : index
    %c0_3 = arith.constant 0 : index
    %c0_4 = arith.constant 0 : index
    %1 = vector.load %arg3[%c0_2, %c0_3, %c0_4] : memref<1x1x128xf32, #tpu.memory_space<vmem>>, vector<1x1x128xf32>
    tpu.vector_store %arg3[%c0_2, %c0_3, %c0_4], %0 {strides = array<i32>} : memref<1x1x128xf32, #tpu.memory_space<vmem>>, vector<1x1x128xf32>,
    return
  }
  func.func @transform_0(%arg0: i32, %arg1: memref<16xi32, #tpu.memory_space<smem>>) -> (i32, i32, i32) {
    %0 = arith.index_cast %arg0 : i32 to index
    %1 = memref.load %arg1[%0] : memref<16xi32, #tpu.memory_space<smem>>
    %c0_i32 = arith.constant 0 : i32
    %c0_i32_0 = arith.constant 0 : i32
    %c0_i32_1 = arith.constant 0 : i32
    return %1, %c0_i32, %c0_i32_0 : i32, i32, i32
  }
  func.func @transform_1(%arg0: i32, %arg1: memref<16xi32, #tpu.memory_space<smem>>) -> (i32, i32, i32) {
    %c0_i32 = arith.constant 0 : i32
    %c0_i32_0 = arith.constant 0 : i32
    %c0_i32_1 = arith.constant 0 : i32
    return %arg0, %c0_i32, %c0_i32_0 : i32, i32, i32
  }
}

</mosaic_0001>

<llo_original>
// kernel: tpu_custom_call.1
$region0: #{tpu_custom_call.1}
  #allocation0 [shape = 'u32[]', space=smem, size = 0x4, offset = 0x4, fixed_abs, tag = 'smem constant byte address 0x4 - core index']
  #allocation1 [shape = 'u32[144,128]{1,0:T(1,128)}', space=vmem, size = 0x12000, scoped, tag = 'internal scratch']
  #allocation2 [shape = 's32[1]{0}', space=sflag, size = 0x4, scoped, tag = 'scoped memory for tpu_custom_call.1']
  #allocation3 [shape = 'u8[512]{0}', space=smem, size = 0x200, scoped, tag = 'prefetched SMEM operand 0']
  %s0 = inlined_call_operand.hbm [shape: s32[16], index: 0, kind: input, shape index: {}]
  %s1 = inlined_call_operand.hbm [shape: f32[128,1,128], index: 1, kind: input, shape index: {}]
  %s2 = inlined_call_operand.hbm [shape: f32[16,1,128], index: 2, kind: output, shape index: {}]
  %s3 = sld [smem:[#allocation0]]
  $region41: #{tpu_custom_call.1} parent=0
    _
  %s5 = ssub.s32 1, %s3
  %s6 = scalar_select 0, %s5, %s3
  %8 = dma.hbm_to_smem %s0, 16, [#allocation3], [#allocation2]
  %9 = dma.done [#allocation2], 16
  %10 = sfence
  $region1: #{tpu_custom_call.1} parent=0
    #allocation4 [shape = 'u8[1024]{0}', space=vmem, size = 0x400, scoped, tag = 'input window, operand 1']
    #allocation5 [shape = 's32[2]{0}', space=sflag, size = 0x8, scoped, tag = 'scoped memory for tpu_custom_call.1']
    #allocation6 [shape = 's32[2]{0}', space=sflag, size = 0x8, scoped, tag = 'scoped memory for tpu_custom_call.1']
    #allocation7 [shape = 'u8[1024]{0}', space=vmem, size = 0x400, scoped, tag = 'output window, operand 0']
    %11 = vsyncpa [#allocation5], 0
    %s12 = scalar_lea.sflag [#allocation5], 1
    %13 = vsyncpa %s12, 0
    %14 = vsyncpa [#allocation6], 0
    %s15 = scalar_lea.sflag [#allocation6], 1
    %16 = vsyncpa %s15, 0
    loop: start=0, step=1, limit=18
    $region2: #{tpu_custom_call.1} parent=1 // loop_pre_header
      _
    $region3: #{tpu_custom_call.1} parent=1 // loop_header
      %s18 = sphi 0, %s22
      %p19 = scmp.ge.s32.totalorder %s18, 18
      %s30 = sphi 0, %s32
      %s33 = sphi 0, %s30
      %s34 = sphi 0, %s33
      %s50 = sphi 0, %s34
      %s56 = sphi 0, %s58
      %s59 = sphi 0, %s56
      %s60 = sphi 0, %s59
      %s76 = sphi 0, %s60
    $region4: #{tpu_custom_call.1} parent=1 // loop_header_branch
      %21 = sbr.rel (%p19) target = $region8
    $region5: #{tpu_custom_call.1} parent=1 // loop_body
      %s23 = ssub.s32 %s18, 1
      %s24 = ssub.s32 %s18, 2
      %s25 = sadd.s32 %s18, 1
      %s26 = sld [smem:[#allocation3 + %s18]]
      %s27 = sld [smem:[#allocation3 + %s25]]
      %s28 = ssub.s32 %s26, %s27
      %p29 = scmp.eq.s32.totalorder %s28, 0
      %s31 = sadd.s32 %s30, 1
      %s32 = scalar_select %p29, %s30, %s31
      %p35 = pneg %p29
      %p36 = scmp.eq.s32.totalorder %s18, 15
      %p37 = por %p35, %p36
      %p38 = scmp.ne.s32.totalorder %s30, %s33
      %p39 = scmp.eq.s32.totalorder %s18, 0
      %p40 = por %p38, %p39
      %p41 = scmp.ne.s32.totalorder %s30, %s33
      %p42 = scmp.eq.s32.totalorder %s23, 15
      %p43 = por %p41, %p42
      %p44 = scmp.ne.s32.totalorder %s33, %s34
      %p45 = scmp.eq.s32.totalorder %s23, 0
      %p46 = por %p44, %p45
      %p47 = scmp.ne.s32.totalorder %s33, %s34
      %p48 = scmp.eq.s32.totalorder %s24, 15
      %p49 = por %p47, %p48
      %p51 = scmp.ne.s32.totalorder %s34, %s50
      %p52 = scmp.eq.s32.totalorder %s24, 0
      %p53 = por %p51, %p52
      %s54 = ssub.s32 %s18, %s25
      %p55 = scmp.eq.s32.totalorder %s54, 0
      %s57 = sadd.s32 %s56, 1
      %s58 = scalar_select %p55, %s56, %s57
      %p61 = pneg %p55
      %p62 = scmp.eq.s32.totalorder %s18, 15
      %p63 = por %p61, %p62
      %p64 = scmp.ne.s32.totalorder %s56, %s59
      %p65 = scmp.eq.s32.totalorder %s18, 0
      %p66 = por %p64, %p65
      %p67 = scmp.ne.s32.totalorder %s56, %s59
      %p68 = scmp.eq.s32.totalorder %s23, 15
      %p69 = por %p67, %p68
      %p70 = scmp.ne.s32.totalorder %s59, %s60
      %p71 = scmp.eq.s32.totalorder %s23, 0
      %p72 = por %p70, %p71
      %p73 = scmp.ne.s32.totalorder %s59, %s60
      %p74 = scmp.eq.s32.totalorder %s24, 15
      %p75 = por %p73, %p74
      %p77 = scmp.ne.s32.totalorder %s60, %s76
      %p78 = scmp.eq.s32.totalorder %s24, 0
      %p79 = por %p77, %p78
      %p80 = scmp.le.s32.totalorder 1, %s18
      %p81 = scmp.lt.s32.totalorder %s18, 17
      %p82 = pnand %p80, %p81
      %p83 = pneg %p82
      // Predicated region
      $region9: #{tpu_custom_call.1} parent=5 // pred_check
        _
      $region10: #{tpu_custom_call.1} parent=5 // pred_check_branch
        %85 = sbr.rel (%p82) target = $region12
      $region11: #{tpu_custom_call.1} parent=5 // pred_region
        %s86 = ssub.s32 %s18, 1
      $region12: #{tpu_custom_call.1} parent=5 // pred_fallthru
        _
      %p87 = scmp.lt.s32.totalorder %s18, 16
      // Predicated region
      $region13: #{tpu_custom_call.1} parent=5 // pred_check
        %p88 = pneg %p87
      $region14: #{tpu_custom_call.1} parent=5 // pred_check_branch
        %90 = sbr.rel (%p88) target = $region16
      $region15: #{tpu_custom_call.1} parent=5 // pred_region
        // Predicated region
        $region17: #{tpu_custom_call.1} parent=15 // pred_check
          %p91 = pneg %p40
        $region18: #{tpu_custom_call.1} parent=15 // pred_check_branch
          %93 = sbr.rel (%p91) target = $region20
        $region19: #{tpu_custom_call.1} parent=15 // pred_region
          %s94 = sand.u32 %s30, 1
          %s95 = scalar_lea.sflag [#allocation5], %s94
          %s96 = sand.u32 %s30, 1
          %s97 = scalar_lea.vmem [#allocation4], %s96
          %s98 = sld [smem:[#allocation3 + %s18]]
          %s100 = ssub.s32 16, 16
          %101 = vsyncadd %s95, %s100
          %s102 = smul.addr %s98, 16
          %s103 = scalar_lea.hbm %s1, %s102
          %s105 = sshll.u32 %s97, 4
          %s106 = int_to_ptr.vmem [resolvable:$true] %s105
          %108 = dma.hbm_to_vmem [thread:$0]  %s103, 16, %s106, %s95
        $region20: #{tpu_custom_call.1} parent=15 // pred_fallthru
          _
      $region16: #{tpu_custom_call.1} parent=5 // pred_fallthru
        _
      %p109 = scmp.le.s32.totalorder 1, %s18
      %p110 = scmp.lt.s32.totalorder %s18, 17
      %p111 = pnand %p109, %p110
      %p112 = pneg %p111
      // Predicated region
      $region21: #{tpu_custom_call.1} parent=5 // pred_check
        _
      $region22: #{tpu_custom_call.1} parent=5 // pred_check_branch
        %114 = sbr.rel (%p111) target = $region24
      $region23: #{tpu_custom_call.1} parent=5 // pred_region
        %s115 = ssub.s32 %s18, 1
        %s116 = sand.u32 %s33, 1
        %s117 = scalar_lea.sflag [#allocation5], %s116
        %s118 = sand.u32 %s33, 1
        %s119 = scalar_lea.vmem [#allocation4], %s118
        // Predicated region
        $region25: #{tpu_custom_call.1} parent=23 // pred_check
          %p120 = pneg %p46
        $region26: #{tpu_custom_call.1} parent=23 // pred_check_branch
          %122 = sbr.rel (%p120) target = $region28
        $region27: #{tpu_custom_call.1} parent=23 // pred_region
          %123 = dma.done %s117, 16
        $region28: #{tpu_custom_call.1} parent=23 // pred_fallthru
          _
        %s124 = sand.u32 %s33, 1
        %s125 = scalar_lea.sflag [#allocation5], %s124
        %s126 = sand.u32 %s33, 1
        %s127 = scalar_lea.vmem [#allocation4], %s126
        %p128 = pneg %p46
        %p129 = pneg %p43
        %p130 = pneg %p72
        %p131 = pneg %p69
        %s132 = sand.u32 %s59, 1
        %s133 = scalar_lea.sflag [#allocation6], %s132
        %s134 = sand.u32 %s59, 1
        %s135 = scalar_lea.vmem [#allocation7], %s134
        %s136 = sld [smem:[#allocation3 + %s23]]
        %v137 = vld [vmem:[%s119] sm:$0x1]
        %138 = vst [vmem:[%s135] sm:$0x1] %v137
        %s139 = sand.u32 %s59, 1
        %s140 = scalar_lea.sflag [#allocation6], %s139
        %s141 = sand.u32 %s59, 1
        %s142 = scalar_lea.vmem [#allocation7], %s141
        // Predicated region
        $region29: #{tpu_custom_call.1} parent=23 // pred_check
          %p143 = pneg %p69
        $region30: #{tpu_custom_call.1} parent=23 // pred_check_branch
          %145 = sbr.rel (%p143) target = $region32
        $region31: #{tpu_custom_call.1} parent=23 // pred_region
          %s147 = ssub.s32 16, 16
          %148 = vsyncadd %s140, %s147
          %s149 = smul.addr %s23, 16
          %s150 = scalar_lea.hbm %s2, %s149
          %s152 = sshll.u32 %s142, 4
          %s153 = int_to_ptr.vmem [resolvable:$true] %s152
          %155 = dma.vmem_to_hbm [thread:$0]  %s153, 16, %s150, %s140
        $region32: #{tpu_custom_call.1} parent=23 // pred_fallthru
          _
      $region24: #{tpu_custom_call.1} parent=5 // pred_fallthru
        _
      %p156 = scmp.le.s32.totalorder 2, %s18
      // Predicated region
      $region33: #{tpu_custom_call.1} parent=5 // pred_check
        %p157 = pneg %p156
      $region34: #{tpu_custom_call.1} parent=5 // pred_check_branch
        %159 = sbr.rel (%p157) target = $region36
      $region35: #{tpu_custom_call.1} parent=5 // pred_region
        %s160 = ssub.s32 %s18, 2
        // Predicated region
        $region37: #{tpu_custom_call.1} parent=35 // pred_check
          %p161 = pneg %p75
        $region38: #{tpu_custom_call.1} parent=35 // pred_check_branch
          %163 = sbr.rel (%p161) target = $region40
        $region39: #{tpu_custom_call.1} parent=35 // pred_region
          %s164 = sand.u32 %s60, 1
          %s165 = scalar_lea.sflag [#allocation6], %s164
          %s166 = sand.u32 %s60, 1
          %s167 = scalar_lea.vmem [#allocation7], %s166
          %168 = dma.done %s165, 16
        $region40: #{tpu_custom_call.1} parent=35 // pred_fallthru
          _
      $region36: #{tpu_custom_call.1} parent=5 // pred_fallthru
        _
    $region6: #{tpu_custom_call.1} parent=1 // loop_footer
      %s22 = sadd.s32 1, %s18
    $region7: #{tpu_custom_call.1} parent=1 // loop_footer_branch
      %17 = sbr.rel target = $region3
    $region8: #{tpu_custom_call.1} parent=1 // loop_exit
      _
    %169 = vsyncpa [#allocation5], 1
    %s170 = scalar_lea.sflag [#allocation5], 1
    %171 = vsyncpa %s170, 1
    %172 = vsyncpa [#allocation6], 1
    %s173 = scalar_lea.sflag [#allocation6], 1
    %174 = vsyncpa %s173, 1

</llo_original>
